<compile_context>
chip_gen: v5e
topology: v5e:2x2
jax: 0.10.0
libtpu: 0.0.40
codegen_flags: <defaults>
</compile_context>

<pallas_src>
import functools

import jax
import jax.numpy as jnp
from jax.experimental import pallas as pl
from jax.experimental.pallas import tpu as pltpu


def _round_up(x, m):
    return ((x + m - 1) // m) * m


def _channel_attention_kernel(x_ref, w1_ref, w2_ref, o_ref, sum_acc, max_acc,
                              *, nb, st, s_tiles, true_s, needs_mask, inv_s):
    s = pl.program_id(1)

    @pl.when(s == 0)
    def _init():
        sum_acc[...] = jnp.zeros_like(sum_acc)
        max_acc[...] = jnp.full_like(max_acc, -jnp.inf)

    x = x_ref[...]                                   # (nb, C, st), native dtype

    # Single pass over the tile: f32 sum accumulation + native-dtype max.
    tile_sum = jnp.sum(x, axis=-1, dtype=jnp.float32)          # (nb, C)
    if needs_mask:
        col = jax.lax.broadcasted_iota(jnp.int32, x.shape, 2) + s * st
        x_for_max = jnp.where(col < true_s, x,
                              jnp.asarray(-jnp.inf, dtype=x.dtype))
    else:
        x_for_max = x
    tile_max = jnp.max(x_for_max, axis=-1).astype(jnp.float32)  # (nb, C)

    sum_acc[...] += tile_sum
    max_acc[...] = jnp.maximum(max_acc[...], tile_max)

    @pl.when(s == s_tiles - 1)
    def _finalize():
        avg = sum_acc[...] * inv_s                   # (nb, C) f32
        mx = max_acc[...]                            # (nb, C) f32
        pooled = jnp.concatenate([avg, mx], axis=0)  # (2*nb, C)

        w1 = w1_ref[...].astype(jnp.float32)         # (C4, C)
        w2 = w2_ref[...].astype(jnp.float32)         # (C, C4)

        # Fused MLP for both pooled vectors: one pair of matmuls.
        h = jax.lax.dot_general(pooled, w1, (((1,), (1,)), ((), ())),
                                preferred_element_type=jnp.float32)  # (2nb, C4)
        h = jnp.maximum(h, 0.0)
        y = jax.lax.dot_general(h, w2, (((1,), (1,)), ((), ())),
                                preferred_element_type=jnp.float32)  # (2nb, C)

        gate = jax.nn.sigmoid(y[:nb] + y[nb:])       # (nb, C)
        o_ref[:, 0, :] = gate.astype(o_ref.dtype)


def _choose_tiling(n, c, s, dtype_bytes, target_bytes):
    """Pick (Nb, St, S_pad): lane-aligned spatial tile / batch block ~target MiB."""
    s128 = _round_up(s, 128)
    per_elem = c * s128 * dtype_bytes
    if per_elem > target_bytes:
        st = max(128, (target_bytes // (c * dtype_bytes)) // 128 * 128)
        st = int(min(st, s128))
        nb = 1
    else:
        st = int(s128)
        nb = 1
        for d in range(n, 0, -1):          # largest divisor of N within budget
            if n % d == 0 and d * per_elem <= target_bytes:
                nb = d
                break
    s_pad = _round_up(s, st)
    return nb, st, s_pad


def channel_attention(x, w1, w2, *, target_tile_bytes=2 * 1024 * 1024):
    """x: (N, C, D, H, W); w1: (C//4, C); w2: (C, C//4) -> (N, C, 1, 1, 1)."""
    n, c, d, h, w = x.shape
    s = d * h * w
    c4 = w1.shape[0]
    dtype_bytes = jnp.dtype(x.dtype).itemsize

    nb, st, s_pad = _choose_tiling(n, c, s, dtype_bytes, target_tile_bytes)
    s_tiles = s_pad // st

    x3 = x.reshape(n, c, s)
    if s_pad != s:
        # Zero-pad the spatial axis (sum unaffected; max is masked in-kernel).
        x3 = jnp.pad(x3, ((0, 0), (0, 0), (0, s_pad - s)))

    kernel = functools.partial(
        _channel_attention_kernel,
        nb=nb, st=st, s_tiles=s_tiles, true_s=s,
        needs_mask=(s_pad != s), inv_s=1.0 / s)

    in_tile_bytes = nb * c * st * dtype_bytes
    vmem_limit = int(min(48 * 1024 * 1024,
                         max(8 * 1024 * 1024, 4 * in_tile_bytes + (2 << 20))))

    gate = pl.pallas_call(
        kernel,
        out_shape=jax.ShapeDtypeStruct((n, 1, c), x.dtype),
        grid_spec=pltpu.PrefetchScalarGridSpec(
            num_scalar_prefetch=0,
            grid=(n // nb, s_tiles),
            in_specs=[
                pl.BlockSpec((nb, c, st), lambda i, j: (i, 0, j)),
                pl.BlockSpec((c4, c), lambda i, j: (0, 0)),   # resident weights
                pl.BlockSpec((c, c4), lambda i, j: (0, 0)),
            ],
            out_specs=pl.BlockSpec((nb, 1, c), lambda i, j: (i, 0, 0)),
            scratch_shapes=[
                pltpu.VMEM((nb, c), jnp.float32),   # running sum
                pltpu.VMEM((nb, c), jnp.float32),   # running max
            ],
        ),
        compiler_params=pltpu.CompilerParams(
            dimension_semantics=("parallel", "arbitrary"),
            vmem_limit_bytes=vmem_limit),
    )(x3, w1, w2)

    return gate[:, 0, :].reshape(n, c, 1, 1, 1)


def channel_attention_ref(x, w1, w2):
    # Pure-JAX reference mirroring the PyTorch forward.
    xf = x.astype(jnp.float32)
    avg = jnp.mean(xf, axis=(2, 3, 4))                     # (N, C)
    mx = jnp.max(xf, axis=(2, 3, 4))                       # (N, C)

    def mlp(v):
        hh = jnp.maximum(v @ w1.astype(jnp.float32).T, 0.0)
        return hh @ w2.astype(jnp.float32).T

    out = jax.nn.sigmoid(mlp(avg) + mlp(mx))               # (N, C)
    return out.reshape(x.shape[0], x.shape[1], 1, 1, 1).astype(x.dtype)


if __name__ == "__main__":
    key = jax.random.PRNGKey(0)
    kx, k1, k2, kx2 = jax.random.split(key, 4)

    # --- Test 1: toy shape; whole batch fits one block (Nb=2, one spatial tile)
    n, c, d, h, w = 2, 16, 8, 8, 8
    c4 = c // 4  # module uses in_planes // 4 (the `ratio` arg is unused)
    x = jax.random.normal(kx, (n, c, d, h, w), dtype=jnp.float32)
    w1 = jax.random.normal(k1, (c4, c), dtype=jnp.float32) * 0.1
    w2 = jax.random.normal(k2, (c, c4), dtype=jnp.float32) * 0.1

    out = jax.block_until_ready(channel_attention(x, w1, w2))
    ref = channel_attention_ref(x, w1, w2)
    assert out.shape == (n, c, 1, 1, 1)
    assert jnp.allclose(out, ref, atol=1e-5, rtol=1e-5), "mismatch (test 1)"

    # --- Test 2: odd spatial size + forced spatial tiling (exercises the
    # multi-tile accumulator path and the -inf padding mask).
    n2, c2, d2, h2, w2s = 1, 8, 5, 7, 9            # S = 315 -> padded to 384
    x2 = jax.random.normal(kx2, (n2, c2, d2, h2, w2s), dtype=jnp.float32)
    w1b = w1[: c2 // 4, :c2]
    w2b = w2[:c2, : c2 // 4]
    out2 = jax.block_until_ready(
        channel_attention(x2, w1b, w2b, target_tile_bytes=4 * 1024))
    ref2 = channel_attention_ref(x2, w1b, w2b)
    assert out2.shape == (n2, c2, 1, 1, 1)
    assert jnp.allclose(out2, ref2, atol=1e-5, rtol=1e-5), "mismatch (test 2)"

    print("KERNEL_OK")
</pallas_src>

<mosaic_0001>
module attributes {stable_mosaic.version = 11 : i64} {
  func.func @_channel_attention_kernel(%arg0: i32, %arg1: i32, %arg2: memref<2x16x512xf32, #tpu.memory_space<vmem>>, %arg3: memref<4x16xf32, #tpu.memory_space<vmem>>, %arg4: memref<16x4xf32, #tpu.memory_space<vmem>>, %arg5: memref<2x1x16xf32, #tpu.memory_space<vmem>>, %arg6: memref<2x16xf32, #tpu.memory_space<vmem>>, %arg7: memref<2x16xf32, #tpu.memory_space<vmem>>) attributes {dimension_semantics = [#tpu.dimension_semantics<parallel>, #tpu.dimension_semantics<arbitrary>], iteration_bounds = array<i64: 1, 1>, scalar_prefetch = 0 : i64, scratch_operands = 2 : i64, tpu.core_type = #tpu.core_type<tc>, window_params = [{transform_indices = @transform_0, window_bounds = array<i64: 2, 16, 512>}, {pipeline_mode = #tpu.pipeline_mode<synchronous>, transform_indices = @transform_1, window_bounds = array<i64: 4, 16>}, {pipeline_mode = #tpu.pipeline_mode<synchronous>, transform_indices = @transform_2, window_bounds = array<i64: 16, 4>}, {transform_indices = @transform_3, window_bounds = array<i64: 2, 1, 16>}]} {
    %c0_i32 = arith.constant 0 : i32
    %0 = arith.cmpi eq, %arg1, %c0_i32 : i32
    %1 = arith.extui %0 : i1 to i32
    %c0_i32_0 = arith.constant 0 : i32
    %2 = arith.cmpi ne, %1, %c0_i32_0 : i32
    scf.if %2 {
      %cst_14 = arith.constant 0.000000e+00 : f32
      %15 = vector.broadcast %cst_14 : f32 to vector<2x16xf32>
      %c0_15 = arith.constant 0 : index
      %c0_16 = arith.constant 0 : index
      %16 = vector.load %arg6[%c0_15, %c0_16] : memref<2x16xf32, #tpu.memory_space<vmem>>, vector<2x16xf32>
      tpu.vector_store %arg6[%c0_15, %c0_16], %15 {strides = array<i32>} : memref<2x16xf32, #tpu.memory_space<vmem>>, vector<2x16xf32>,
      %cst_17 = arith.constant 0xFF800000 : f32
      %17 = vector.broadcast %cst_17 : f32 to vector<2x16xf32>
      %c0_18 = arith.constant 0 : index
      %c0_19 = arith.constant 0 : index
      %18 = vector.load %arg7[%c0_18, %c0_19] : memref<2x16xf32, #tpu.memory_space<vmem>>, vector<2x16xf32>
      tpu.vector_store %arg7[%c0_18, %c0_19], %17 {strides = array<i32>} : memref<2x16xf32, #tpu.memory_space<vmem>>, vector<2x16xf32>,
    } else {
    }
    %c0 = arith.constant 0 : index
    %c0_1 = arith.constant 0 : index
    %c0_2 = arith.constant 0 : index
    %3 = vector.load %arg2[%c0, %c0_1, %c0_2] : memref<2x16x512xf32, #tpu.memory_space<vmem>>, vector<2x16x512xf32>
    %cst = arith.constant dense<0.000000e+00> : vector<2x16xf32>
    %4 = vector.multi_reduction <add>, %3, %cst [2] : vector<2x16x512xf32> to vector<2x16xf32>
    %cst_3 = arith.constant dense<0xFF800000> : vector<2x16xf32>
    %5 = vector.multi_reduction <maximumf>, %3, %cst_3 [2] : vector<2x16x512xf32> to vector<2x16xf32>
    %c0_4 = arith.constant 0 : index
    %c0_5 = arith.constant 0 : index
    %6 = vector.load %arg6[%c0_4, %c0_5] : memref<2x16xf32, #tpu.memory_space<vmem>>, vector<2x16xf32>
    %7 = arith.addf %6, %4 : vector<2x16xf32>
    %c0_6 = arith.constant 0 : index
    %c0_7 = arith.constant 0 : index
    %8 = vector.load %arg6[%c0_6, %c0_7] : memref<2x16xf32, #tpu.memory_space<vmem>>, vector<2x16xf32>
    tpu.vector_store %arg6[%c0_6, %c0_7], %7 {strides = array<i32>} : memref<2x16xf32, #tpu.memory_space<vmem>>, vector<2x16xf32>,
    %c0_8 = arith.constant 0 : index
    %c0_9 = arith.constant 0 : index
    %9 = vector.load %arg7[%c0_8, %c0_9] : memref<2x16xf32, #tpu.memory_space<vmem>>, vector<2x16xf32>
    %10 = arith.maximumf %9, %5 : vector<2x16xf32>
    %c0_10 = arith.constant 0 : index
    %c0_11 = arith.constant 0 : index
    %11 = vector.load %arg7[%c0_10, %c0_11] : memref<2x16xf32, #tpu.memory_space<vmem>>, vector<2x16xf32>
    tpu.vector_store %arg7[%c0_10, %c0_11], %10 {strides = array<i32>} : memref<2x16xf32, #tpu.memory_space<vmem>>, vector<2x16xf32>,
    %c0_i32_12 = arith.constant 0 : i32
    %12 = arith.cmpi eq, %arg1, %c0_i32_12 : i32
    %13 = arith.extui %12 : i1 to i32
    %c0_i32_13 = arith.constant 0 : i32
    %14 = arith.cmpi ne, %13, %c0_i32_13 : i32
    scf.if %14 {
      %c0_14 = arith.constant 0 : index
      %c0_15 = arith.constant 0 : index
      %15 = vector.load %arg6[%c0_14, %c0_15] : memref<2x16xf32, #tpu.memory_space<vmem>>, vector<2x16xf32>
      %cst_16 = arith.constant 0.001953125 : f32
      %16 = vector.broadcast %cst_16 : f32 to vector<2x16xf32>
      %17 = arith.mulf %15, %16 : vector<2x16xf32>
      %c0_17 = arith.constant 0 : index
      %c0_18 = arith.constant 0 : index
      %18 = vector.load %arg7[%c0_17, %c0_18] : memref<2x16xf32, #tpu.memory_space<vmem>>, vector<2x16xf32>
      %19 = tpu.concatenate %17, %18 in 0 : vector<2x16xf32>, vector<2x16xf32> -> vector<4x16xf32>
      %c0_19 = arith.constant 0 : index
      %c0_20 = arith.constant 0 : index
      %20 = vector.load %arg3[%c0_19, %c0_20] : memref<4x16xf32, #tpu.memory_space<vmem>>, vector<4x16xf32>
      %c0_21 = arith.constant 0 : index
      %c0_22 = arith.constant 0 : index
      %21 = vector.load %arg4[%c0_21, %c0_22] : memref<16x4xf32, #tpu.memory_space<vmem>>, vector<16x4xf32>
      %cst_23 = arith.constant dense<0.000000e+00> : vector<4x4xf32>
      %22 = tpu.matmul %19, %20, %cst_23 {dimension_numbers = #tpu.dot_dimension_numbers<[1], [1], [0], [0], [0, 0, 1, 0], [], []>} : vector<4x16xf32>, vector<4x16xf32>, vector<4x4xf32> -> vector<4x4xf32>
      %cst_24 = arith.constant 0.000000e+00 : f32
      %23 = vector.broadcast %cst_24 : f32 to vector<4x4xf32>
      %24 = arith.maximumf %22, %23 : vector<4x4xf32>
      %cst_25 = arith.constant dense<0.000000e+00> : vector<4x16xf32>
      %25 = tpu.matmul %24, %21, %cst_25 {dimension_numbers = #tpu.dot_dimension_numbers<[1], [1], [0], [0], [0, 0, 1, 0], [], []>} : vector<4x4xf32>, vector<16x4xf32>, vector<4x16xf32> -> vector<4x16xf32>
      %26 = vector.extract_strided_slice %25 {offsets = [0, 0], sizes = [2, 16], strides = [1, 1]} : vector<4x16xf32> to vector<2x16xf32>
      %27 = vector.extract_strided_slice %25 {offsets = [2, 0], sizes = [2, 16], strides = [1, 1]} : vector<4x16xf32> to vector<2x16xf32>
      %28 = arith.addf %26, %27 : vector<2x16xf32>
      %29 = arith.negf %28 : vector<2x16xf32>
      %30 = math.exp %29 : vector<2x16xf32>
      %cst_26 = arith.constant 1.000000e+00 : f32
      %31 = vector.broadcast %cst_26 : f32 to vector<2x16xf32>
      %32 = arith.addf %31, %30 : vector<2x16xf32>
      %33 = arith.divf %31, %32 : vector<2x16xf32>
      %c0_27 = arith.constant 0 : index
      %c0_28 = arith.constant 0 : index
      %c0_29 = arith.constant 0 : index
      %34 = vector.load %arg5[%c0_27, %c0_28, %c0_29] : memref<2x1x16xf32, #tpu.memory_space<vmem>>, vector<2x1x16xf32>
      %35 = vector.shape_cast %34 : vector<2x1x16xf32> to vector<2x16xf32>
      %36 = vector.shape_cast %33 : vector<2x16xf32> to vector<2x1x16xf32>
      tpu.vector_store %arg5[%c0_27, %c0_28, %c0_29], %36 {strides = array<i32>} : memref<2x1x16xf32, #tpu.memory_space<vmem>>, vector<2x1x16xf32>,
    } else {
    }
    return
  }
  func.func @transform_0(%arg0: i32, %arg1: i32) -> (i32, i32, i32) {
    %c0_i32 = arith.constant 0 : i32
    %c0_i32_0 = arith.constant 0 : i32
    return %arg0, %c0_i32, %arg1 : i32, i32, i32
  }
  func.func @transform_1(%arg0: i32, %arg1: i32) -> (i32, i32) {
    %c0_i32 = arith.constant 0 : i32
    %c0_i32_0 = arith.constant 0 : i32
    %c0_i32_1 = arith.constant 0 : i32
    return %c0_i32, %c0_i32_0 : i32, i32
  }
  func.func @transform_2(%arg0: i32, %arg1: i32) -> (i32, i32) {
    %c0_i32 = arith.constant 0 : i32
    %c0_i32_0 = arith.constant 0 : i32
    %c0_i32_1 = arith.constant 0 : i32
    return %c0_i32, %c0_i32_0 : i32, i32
  }
  func.func @transform_3(%arg0: i32, %arg1: i32) -> (i32, i32, i32) {
    %c0_i32 = arith.constant 0 : i32
    %c0_i32_0 = arith.constant 0 : i32
    %c0_i32_1 = arith.constant 0 : i32
    return %arg0, %c0_i32, %c0_i32_0 : i32, i32, i32
  }
}

</mosaic_0001>

<llo_original>
// kernel: tpu_custom_call.1
$region0: #{tpu_custom_call.1}
  #allocation0 [shape = 'u32[]', space=smem, size = 0x4, offset = 0x4, fixed_abs, tag = 'smem constant byte address 0x4 - core index']
  #allocation1 [shape = 'u32[72,128]{1,0:T(1,128)}', space=vmem, size = 0x9000, scoped, tag = 'internal scratch']
  #allocation2 [shape = 'f32[2,16]{1,0:T(2,128)}', space=vmem, size = 0x400, scoped, tag = 'scratch operand']
  #allocation3 [shape = 'f32[2,16]{1,0:T(2,128)}', space=vmem, size = 0x400, scoped, tag = 'scratch operand']
  %s0 = inlined_call_operand.hbm [shape: f32[2,16,512], index: 0, kind: input, shape index: {}]
  %s1 = inlined_call_operand.vmem [shape: f32[4,16], index: 1, kind: input, shape index: {}]
  %s2 = inlined_call_operand.vmem [shape: f32[16,4], index: 2, kind: input, shape index: {}]
  %s3 = inlined_call_operand.hbm [shape: f32[2,1,16], index: 3, kind: output, shape index: {}]
  %s4 = sld [smem:[#allocation0]]
  $region34: #{tpu_custom_call.1} parent=0
    _
  %s6 = ssub.s32 1, %s4
  %s7 = scalar_select 0, %s6, %s4
  $region1: #{tpu_custom_call.1} parent=0
    #allocation4 [shape = 'u8[65536]{0}', space=vmem, size = 0x10000, scoped, tag = 'input window, operand 0, single buffered']
    #allocation5 [shape = 's32[1]{0}', space=sflag, size = 0x4, scoped, tag = 'scoped memory for tpu_custom_call.1']
    #allocation6 [shape = 's32[1]{0}', space=sflag, size = 0x4, scoped, tag = 'scoped memory for tpu_custom_call.1']
    #allocation7 [shape = 'u8[1024]{0}', space=vmem, size = 0x400, scoped, tag = 'output window, operand 0, single buffered']
    %8 = vsyncpa [#allocation5], 0
    %9 = vsyncpa [#allocation6], 0
    // Predicated region
    $region2: #{tpu_custom_call.1} parent=1 // pred_check
      _
    $region3: #{tpu_custom_call.1} parent=1 // pred_check_branch
      %11 = sbr.rel (0) target = $region5
    $region4: #{tpu_custom_call.1} parent=1 // pred_region
      %13 = vsyncadd [#allocation5], 0
      %s14 = sshll.u32 %s0, 4
      %s15 = int_to_ptr.hbm [resolvable:$true] %s14
      %s16 = sshll.u32 [#allocation4], 4
      %s17 = int_to_ptr.vmem [resolvable:$true] %s16
      %22 = dma.hbm_to_vmem [thread:$0]  %s15, 2048, %s17, [#allocation5], 512, 512, 32
    $region5: #{tpu_custom_call.1} parent=1 // pred_fallthru
      _
    // Predicated region
    $region6: #{tpu_custom_call.1} parent=1 // pred_check
      _
    $region7: #{tpu_custom_call.1} parent=1 // pred_check_branch
      %24 = sbr.rel (0) target = $region9
    $region8: #{tpu_custom_call.1} parent=1 // pred_region
      _
    $region9: #{tpu_custom_call.1} parent=1 // pred_fallthru
      _
    // Predicated region
    $region10: #{tpu_custom_call.1} parent=1 // pred_check
      _
    $region11: #{tpu_custom_call.1} parent=1 // pred_check_branch
      %26 = sbr.rel (0) target = $region13
    $region12: #{tpu_custom_call.1} parent=1 // pred_region
      _
    $region13: #{tpu_custom_call.1} parent=1 // pred_fallthru
      _
    // Predicated region
    $region14: #{tpu_custom_call.1} parent=1 // pred_check
      _
    $region15: #{tpu_custom_call.1} parent=1 // pred_check_branch
      %28 = sbr.rel (0) target = $region17
    $region16: #{tpu_custom_call.1} parent=1 // pred_region
      %30 = dma.done [#allocation5], 2048
    $region17: #{tpu_custom_call.1} parent=1 // pred_fallthru
      _
    %p31 = scmp.eq.s32.totalorder 0, 0
    // Predicated region
    $region18: #{tpu_custom_call.1} parent=1 // pred_check
      %p32 = pneg %p31
    $region19: #{tpu_custom_call.1} parent=1 // pred_check_branch
      %34 = sbr.rel (%p32) target = $region21
    $region20: #{tpu_custom_call.1} parent=1 // pred_region
      %vm35 = vcmask 123904
      %36 = vst.msk [vmem:[#allocation2] sm:$0x3] %vm35, 0.0
      %37 = vst.msk [vmem:[#allocation3] sm:$0x3] %vm35, -inf
    $region21: #{tpu_custom_call.1} parent=1 // pred_fallthru
      _
    %v38 = vld [vmem:[#allocation4] sm:$0xff]
    %v39 = vld [vmem:[#allocation4 + $0x8] sm:$0xff]
    %v40 = vld [vmem:[#allocation4 + $0x10] sm:$0xff]
    %v41 = vld [vmem:[#allocation4 + $0x18] sm:$0xff]
    %v42 = vld [vmem:[#allocation4 + $0x20] sm:$0xff]
    %v43 = vld [vmem:[#allocation4 + $0x28] sm:$0xff]
    %v44 = vld [vmem:[#allocation4 + $0x30] sm:$0xff]
    %v45 = vld [vmem:[#allocation4 + $0x38] sm:$0xff]
    %v46 = vld [vmem:[#allocation4 + $0x40] sm:$0xff]
    %v47 = vld [vmem:[#allocation4 + $0x48] sm:$0xff]
    %v48 = vld [vmem:[#allocation4 + $0x50] sm:$0xff]
    %v49 = vld [vmem:[#allocation4 + $0x58] sm:$0xff]
    %v50 = vld [vmem:[#allocation4 + $0x60] sm:$0xff]
    %v51 = vld [vmem:[#allocation4 + $0x68] sm:$0xff]
    %v52 = vld [vmem:[#allocation4 + $0x70] sm:$0xff]
    %v53 = vld [vmem:[#allocation4 + $0x78] sm:$0xff]
    %v54 = vadd.f32 %v38, %v39
    %v55 = vadd.f32 %v54, %v40
    %v56 = vadd.f32 %v55, %v41
    %57 = vadd.xlane.f32.xlu0 %v56
    %v58 = vpop.xlane.xlu0 %57
    %v59 = vadd.f32 %v42, %v43
    %v60 = vadd.f32 %v59, %v44
    %v61 = vadd.f32 %v60, %v45
    %62 = vadd.xlane.f32.xlu0 %v61
    %v63 = vpop.xlane.xlu0 %62
    %v64 = vadd.f32 %v46, %v47
    %v65 = vadd.f32 %v64, %v48
    %v66 = vadd.f32 %v65, %v49
    %67 = vadd.xlane.f32.xlu0 %v66
    %v68 = vpop.xlane.xlu0 %67
    %v69 = vadd.f32 %v50, %v51
    %v70 = vadd.f32 %v69, %v52
    %v71 = vadd.f32 %v70, %v53
    %72 = vadd.xlane.f32.xlu0 %v71
    %v73 = vpop.xlane.xlu0 %72
    %v74 = vmax.f32 %v38, %v39
    %v75 = vmax.f32 %v74, %v40
    %v76 = vmax.f32 %v75, %v41
    %77 = vmax.xlane.f32.xlu0 %v76
    %v78 = vpop.xlane.xlu0 %77
    %v79 = vmax.f32 %v42, %v43
    %v80 = vmax.f32 %v79, %v44
    %v81 = vmax.f32 %v80, %v45
    %82 = vmax.xlane.f32.xlu0 %v81
    %v83 = vpop.xlane.xlu0 %82
    %v84 = vmax.f32 %v46, %v47
    %v85 = vmax.f32 %v84, %v48
    %v86 = vmax.f32 %v85, %v49
    %87 = vmax.xlane.f32.xlu0 %v86
    %v88 = vpop.xlane.xlu0 %87
    %v89 = vmax.f32 %v50, %v51
    %v90 = vmax.f32 %v89, %v52
    %v91 = vmax.f32 %v90, %v53
    %92 = vmax.xlane.f32.xlu0 %v91
    %v93 = vpop.xlane.xlu0 %92
    %v94 = vld [vmem:[#allocation2] sm:$0x3]
    %v99 = vlaneseq
    %v100 = vand.u32 %v99, 127
    %v101 = vperm.slane %v58, %v100
    %v102 = vadd.s32 %v100, 4294967288
    %v103 = vperm.slane %v63, %v102
    %vm104 = vcmask 130112
    %v105 = vsel %vm104, %v103, %v101
    %v106 = vperm.slane %v68, %v100
    %v107 = vperm.slane %v73, %v102
    %v108 = vsel %vm104, %v107, %v106
    %vm109 = vcmask 1041409
    %v110 = vsel %vm109, %v108, %v105
    %v112 = vadd.f32 %v94, %v110
    %vm113 = vcmask 123904
    %114 = vst.msk [vmem:[#allocation2] sm:$0x3] %vm113, %v112
    %v115 = vld [vmem:[#allocation3] sm:$0x3]
    %v120 = vperm.slane %v78, %v100
    %v121 = vperm.slane %v83, %v102
    %v122 = vsel %vm104, %v121, %v120
    %v123 = vperm.slane %v88, %v100
    %v124 = vperm.slane %v93, %v102
    %v125 = vsel %vm104, %v124, %v123
    %v126 = vsel %vm109, %v125, %v122
    %v128 = vmax.f32 %v115, %v126
    %129 = vst.msk [vmem:[#allocation3] sm:$0x3] %vm113, %v128
    // Predicated region
    $region22: #{tpu_custom_call.1} parent=1 // pred_check
      %p130 = pneg %p31
    $region23: #{tpu_custom_call.1} parent=1 // pred_check_branch
      %132 = sbr.rel (%p130) target = $region25
    $region24: #{tpu_custom_call.1} parent=1 // pred_region
      %v133 = vld [vmem:[#allocation2] sm:$0x3]
      %v134 = vmul.f32 %v133, 0.001953125
      %v135 = vld [vmem:[#allocation3] sm:$0x3]
      %v137 = vrot.slane %v135, 6
      %vm139 = vcmask 1041408
      %v140 = vsel %vm139, %v134, %v137
      %v141 = vld [vmem:[%s1] sm:$0xf]
      %v142 = vld [vmem:[%s2] sm:$0xff]
      %v143 = vld [vmem:[%s2 + $0x8] sm:$0xff]
      %vm144 = vcmask 130048
      %v146 = vsel %vm144, %v140, 0
      %v149 = vsel %vm144, %v141, 0
      %151 = vmatpush.xpose.msra.mxu0 0.0
      %152 = vmatpush.xpose.msra.mxu0 0.0
      %153 = vmatpush.xpose.msra.mxu0 0.0
      %154 = vmatpush.xpose.msra.mxu0 0.0
      %155 = vmatpush.xpose.msra.mxu0 0.0
      %156 = vmatpush.xpose.msra.mxu0 0.0
      %157 = vmatpush.xpose.msra.mxu0 0.0
      %158 = vmatpush.xpose.msra.mxu0 0.0
      %159 = vmatpush.xpose.msra.mxu0 0.0
      %160 = vmatpush.xpose.msra.mxu0 0.0
      %161 = vmatpush.xpose.msra.mxu0 0.0
      %162 = vmatpush.xpose.msra.mxu0 0.0
      %163 = vmatpush.xpose.msra.mxu0 0.0
      %164 = vmatpush.xpose.msra.mxu0 0.0
      %165 = vmatpush.xpose.msra.mxu0 0.0
      %166 = vmatpush.xpose.msra.mxu0 %v149
      %167 = vmatmul.f32.gmra.mxu0 %v146
      %v168 = vpop.f32.mrf.mxu0
      %v169 = vadd.f32 0.0, %v168
      %170 = vdwg.mxu0
      %v171 = vmax.f32 %v169, 0.0
      %vm172 = vcmask 31744
      %v174 = vsel %vm172, %v171, 0
      %v177 = vsel %vm172, %v142, 0
      %v180 = vsel %vm172, %v143, 0
      %182 = vmatpush.xpose.msra.mxu0 0.0
      %183 = vmatpush.xpose.msra.mxu0 0.0
      %184 = vmatpush.xpose.msra.mxu0 0.0
      %185 = vmatpush.xpose.msra.mxu0 0.0
      %186 = vmatpush.xpose.msra.mxu0 0.0
      %187 = vmatpush.xpose.msra.mxu0 0.0
      %188 = vmatpush.xpose.msra.mxu0 0.0
      %189 = vmatpush.xpose.msra.mxu0 0.0
      %190 = vmatpush.xpose.msra.mxu0 0.0
      %191 = vmatpush.xpose.msra.mxu0 0.0
      %192 = vmatpush.xpose.msra.mxu0 0.0
      %193 = vmatpush.xpose.msra.mxu0 0.0
      %194 = vmatpush.xpose.msra.mxu0 0.0
      %195 = vmatpush.xpose.msra.mxu0 0.0
      %196 = vmatpush.xpose.msra.mxu0 %v180
      %197 = vmatpush.xpose.msra.mxu0 %v177
      %198 = vmatmul.f32.gmra.mxu0 %v174
      %v199 = vpop.f32.mrf.mxu0
      %v200 = vadd.f32 0.0, %v199
      %201 = vdwg.mxu0
      %v203 = vrot.slane %v200, 2
      %v205 = vadd.f32 %v200, %v203
      %v206 = vxor.u32 %v205, 2147483648
      %v207 = vmul.f32 %v206, 1.442695
      %v208 = vpow.pop %v207
      %v209 = vadd.f32 %v208, 1.0
      %v210 = vrcp.pop %v209
      %v211 = vmul.f32 %v209, %v210
      %v212 = vsub.f32 1.0, %v211
      %v213 = vmul.f32 %v210, %v212
      %v214 = vadd.f32 %v210, %v213
      %vm215 = vweird.f32 %v209
      %vm216 = vweird.f32 %v210
      %vm217 = vmor %vm215, %vm216
      %v218 = vsel %vm217, %v210, %v214
      %v219 = vand.u32 2147483647, %v209
      %vm220 = vcmp.eq.f32.partialorder %v219, 8.507059e+37
      %v221 = vand.u32 %v209, 2147483648
      %v222 = vor.u32 1.1754944e-38, %v221
      %v223 = vsel %vm220, %v222, %v218
      %v224 = vmul.f32 1.0, %v223
      %v226 = vrot.slane %v224, 1
      %vm228 = vcmask 122880
      %229 = vst.msk [vmem:[#allocation7] sm:$0x1] %vm228, %v224
      %230 = vst.msk [vmem:[#allocation7 + $0x1] sm:$0x1] %vm228, %v226
    $region25: #{tpu_custom_call.1} parent=1 // pred_fallthru
      _
    // Predicated region
    $region26: #{tpu_custom_call.1} parent=1 // pred_check
      _
    $region27: #{tpu_custom_call.1} parent=1 // pred_check_branch
      %232 = sbr.rel (0) target = $region29
    $region28: #{tpu_custom_call.1} parent=1 // pred_region
      %234 = vsyncadd [#allocation6], 0
      %s235 = sshll.u32 [#allocation7], 4
      %s236 = int_to_ptr.vmem [resolvable:$true] %s235
      %s237 = sshll.u32 %s3, 4
      %s238 = int_to_ptr.hbm [resolvable:$true] %s237
      %243 = dma.vmem_to_hbm [thread:$0]  %s236, 32, %s238, [#allocation6], 16, 16, 1
    $region29: #{tpu_custom_call.1} parent=1 // pred_fallthru
      _
    // Predicated region
    $region30: #{tpu_custom_call.1} parent=1 // pred_check
      _
    $region31: #{tpu_custom_call.1} parent=1 // pred_check_branch
      %245 = sbr.rel (0) target = $region33
    $region32: #{tpu_custom_call.1} parent=1 // pred_region
      %247 = dma.done [#allocation6], 32
    $region33: #{tpu_custom_call.1} parent=1 // pred_fallthru
      _
    %248 = vsyncpa [#allocation5], 1
    %249 = vsyncpa [#allocation6], 1

</llo_original>
